<compile_context>
chip_gen: v6e
topology: v6e:2x2x1
jax: 0.10.0
libtpu: 0.0.40
codegen_flags: <defaults>
</compile_context>

<pallas_src>
import jax
import jax.numpy as jnp
from jax.experimental import pallas as pl
from jax.experimental.pallas import tpu as pltpu


HIDDEN = 1024  # fixed by the module definition (nn.Linear(..., 1024))


def discriminator_kernel(x_ref, att_ref, w1x_ref, w1a_ref, b1_ref,
                         w2_ref, b2_ref, out_ref):
    # x_ref:   [TM, res_size]     att_ref: [TM, att_num]
    # w1x_ref: [res_size, HIDDEN] w1a_ref: [att_num, HIDDEN]
    # b1_ref:  [1, HIDDEN]        w2_ref:  [1, HIDDEN]
    # b2_ref:  [1] (SMEM scalar)  out_ref: [TM, 1]

    # fc1 split across the concat boundary; both partial dots accumulate in f32.
    z1 = jnp.dot(x_ref[...], w1x_ref[...], preferred_element_type=jnp.float32)
    z1 = z1 + jnp.dot(att_ref[...], w1a_ref[...],
                      preferred_element_type=jnp.float32)
    z1 = z1 + b1_ref[...]

    # LeakyReLU(0.2)
    a1 = jnp.where(z1 > 0, z1, 0.2 * z1)

    # fc2: [TM,1024]@[1024,1] would waste the MXU at 1/128-1/256 width, so do
    # it as a VPU multiply + XLU lane reduction in otherwise-idle slots.
    z2 = jnp.sum(a1 * w2_ref[...], axis=-1, keepdims=True) + b2_ref[0]
    out_ref[...] = z2.astype(out_ref.dtype)


def discriminator_forward(x, att, w1, b1, w2, b2, *, tm=512):
    """x: [B, res_size], att: [B, att_num]. Returns [B, 1] float32."""
    B, res_size = x.shape
    att_num = att.shape[1]
    assert w1.shape == (res_size + att_num, HIDDEN)

    # Split fc1 weight at the concat boundary (trace-time view; avoids ever
    # materializing the concatenated activation in HBM).
    w1x = w1[:res_size]
    w1a = w1[res_size:]
    b1_2d = b1.reshape(1, HIDDEN)
    w2_row = w2.reshape(1, HIDDEN)
    b2_1d = b2.reshape(1).astype(jnp.float32)

    # Batch tiling: multiple of 8 sublanes, no larger than the (padded) batch.
    tm = int(min(tm, pl.cdiv(B, 8) * 8))
    b_pad = pl.cdiv(B, tm) * tm
    if b_pad != B:
        pad = ((0, b_pad - B), (0, 0))
        x = jnp.pad(x, pad)
        att = jnp.pad(att, pad)

    out = pl.pallas_call(
        discriminator_kernel,
        out_shape=jax.ShapeDtypeStruct((b_pad, 1), jnp.float32),
        grid=(b_pad // tm,),
        in_specs=[
            pl.BlockSpec((tm, res_size), lambda i: (i, 0)),     # x tile
            pl.BlockSpec((tm, att_num), lambda i: (i, 0)),      # att tile
            pl.BlockSpec((res_size, HIDDEN), lambda i: (0, 0)),  # resident w1x
            pl.BlockSpec((att_num, HIDDEN), lambda i: (0, 0)),   # resident w1a
            pl.BlockSpec((1, HIDDEN), lambda i: (0, 0)),         # resident b1
            pl.BlockSpec((1, HIDDEN), lambda i: (0, 0)),         # resident w2
            pl.BlockSpec(memory_space=pltpu.MemorySpace.SMEM),   # b2 scalar
        ],
        out_specs=pl.BlockSpec((tm, 1), lambda i: (i, 0)),
        compiler_params=pltpu.CompilerParams(
            dimension_semantics=("parallel",),  # shard batch tiles across TCs (v7x)
        ),
    )(x, att, w1x, w1a, b1_2d, w2_row, b2_1d)

    return out[:B]


def init_params(key, res_size, att_num):
    """weights_init: Linear weights ~ N(0, 0.02), biases = 0."""
    d_in = res_size + att_num
    k1, k2 = jax.random.split(key)
    # PyTorch stores [out, in]; we store transposed [in, out] for x @ W.
    w1 = (jax.random.normal(k1, (HIDDEN, d_in), jnp.float32) * 0.02).T
    b1 = jnp.zeros((HIDDEN,), jnp.float32)
    w2 = (jax.random.normal(k2, (1, HIDDEN), jnp.float32) * 0.02).T
    b2 = jnp.zeros((1,), jnp.float32)
    return w1, b1, w2, b2


if __name__ == "__main__":
    key = jax.random.PRNGKey(0)
    B, res_size, att_num = 8, 32, 16

    kx, katt, kp = jax.random.split(key, 3)
    x = jax.random.normal(kx, (B, res_size), jnp.float32)
    att = jax.random.normal(katt, (B, att_num), jnp.float32)
    w1, b1, w2, b2 = init_params(kp, res_size, att_num)

    out = discriminator_forward(x, att, w1, b1, w2, b2)
    out = jax.block_until_ready(out)

    # reference check in plain JAX (matches the PyTorch forward semantics)
    h = jnp.concatenate([x, att], axis=1)
    z1 = h @ w1 + b1
    a1 = jnp.where(z1 > 0, z1, 0.2 * z1)
    ref = a1 @ w2 + b2
    assert out.shape == (B, 1)
    assert jnp.allclose(out, ref, atol=1e-5, rtol=1e-4)

    print("KERNEL_OK")
</pallas_src>

<mosaic_0001>
module attributes {stable_mosaic.version = 11 : i64} {
  func.func @discriminator_kernel(%arg0: i32, %arg1: memref<8x32xf32, #tpu.memory_space<vmem>>, %arg2: memref<8x16xf32, #tpu.memory_space<vmem>>, %arg3: memref<32x1024xf32, #tpu.memory_space<vmem>>, %arg4: memref<16x1024xf32, #tpu.memory_space<vmem>>, %arg5: memref<1x1024xf32, #tpu.memory_space<vmem>>, %arg6: memref<1x1024xf32, #tpu.memory_space<vmem>>, %arg7: memref<1xf32, #tpu.memory_space<smem>>, %arg8: memref<8x1xf32, #tpu.memory_space<vmem>>) attributes {dimension_semantics = [#tpu.dimension_semantics<parallel>], iteration_bounds = array<i64: 1>, scalar_prefetch = 0 : i64, scratch_operands = 0 : i64, tpu.core_type = #tpu.core_type<tc>, window_params = [{transform_indices = @transform_0, window_bounds = array<i64: 8, 32>}, {transform_indices = @transform_1, window_bounds = array<i64: 8, 16>}, {pipeline_mode = #tpu.pipeline_mode<synchronous>, transform_indices = @transform_2, window_bounds = array<i64: 32, 1024>}, {pipeline_mode = #tpu.pipeline_mode<synchronous>, transform_indices = @transform_3, window_bounds = array<i64: 16, 1024>}, {pipeline_mode = #tpu.pipeline_mode<synchronous>, transform_indices = @transform_4, window_bounds = array<i64: 1, 1024>}, {pipeline_mode = #tpu.pipeline_mode<synchronous>, transform_indices = @transform_5, window_bounds = array<i64: 1, 1024>}, {transform_indices = @transform_6, window_bounds = array<i64: 1>}, {transform_indices = @transform_7, window_bounds = array<i64: 8, 1>}]} {
    %c0 = arith.constant 0 : index
    %c0_0 = arith.constant 0 : index
    %0 = vector.load %arg1[%c0, %c0_0] : memref<8x32xf32, #tpu.memory_space<vmem>>, vector<8x32xf32>
    %c0_1 = arith.constant 0 : index
    %c0_2 = arith.constant 0 : index
    %1 = vector.load %arg3[%c0_1, %c0_2] : memref<32x1024xf32, #tpu.memory_space<vmem>>, vector<32x1024xf32>
    %cst = arith.constant dense<0.000000e+00> : vector<8x1024xf32>
    %2 = tpu.matmul %0, %1, %cst {dimension_numbers = #tpu.dot_dimension_numbers<[1], [0], [0], [1], [0, 0, 1, 1], [], []>} : vector<8x32xf32>, vector<32x1024xf32>, vector<8x1024xf32> -> vector<8x1024xf32>
    %c0_3 = arith.constant 0 : index
    %c0_4 = arith.constant 0 : index
    %3 = vector.load %arg2[%c0_3, %c0_4] : memref<8x16xf32, #tpu.memory_space<vmem>>, vector<8x16xf32>
    %c0_5 = arith.constant 0 : index
    %c0_6 = arith.constant 0 : index
    %4 = vector.load %arg4[%c0_5, %c0_6] : memref<16x1024xf32, #tpu.memory_space<vmem>>, vector<16x1024xf32>
    %cst_7 = arith.constant dense<0.000000e+00> : vector<8x1024xf32>
    %5 = tpu.matmul %3, %4, %cst_7 {dimension_numbers = #tpu.dot_dimension_numbers<[1], [0], [0], [1], [0, 0, 1, 1], [], []>} : vector<8x16xf32>, vector<16x1024xf32>, vector<8x1024xf32> -> vector<8x1024xf32>
    %6 = arith.addf %2, %5 : vector<8x1024xf32>
    %c0_8 = arith.constant 0 : index
    %c0_9 = arith.constant 0 : index
    %7 = vector.load %arg5[%c0_8, %c0_9] : memref<1x1024xf32, #tpu.memory_space<vmem>>, vector<1x1024xf32>
    %8 = vector.broadcast %7 : vector<1x1024xf32> to vector<8x1024xf32>
    %9 = arith.addf %6, %8 : vector<8x1024xf32>
    %cst_10 = arith.constant 0.000000e+00 : f32
    %10 = vector.broadcast %cst_10 : f32 to vector<8x1024xf32>
    %11 = arith.cmpf ogt, %9, %10 : vector<8x1024xf32>
    %cst_11 = arith.constant 2.000000e-01 : f32
    %12 = vector.broadcast %cst_11 : f32 to vector<8x1024xf32>
    %13 = arith.mulf %12, %9 : vector<8x1024xf32>
    %14 = arith.select %11, %9, %13 : vector<8x1024xi1>, vector<8x1024xf32>
    %c0_12 = arith.constant 0 : index
    %c0_13 = arith.constant 0 : index
    %15 = vector.load %arg6[%c0_12, %c0_13] : memref<1x1024xf32, #tpu.memory_space<vmem>>, vector<1x1024xf32>
    %16 = vector.broadcast %15 : vector<1x1024xf32> to vector<8x1024xf32>
    %17 = arith.mulf %14, %16 : vector<8x1024xf32>
    %cst_14 = arith.constant dense<0.000000e+00> : vector<8xf32>
    %18 = vector.multi_reduction <add>, %17, %cst_14 [1] : vector<8x1024xf32> to vector<8xf32>
    %19 = vector.shape_cast %18 : vector<8xf32> to vector<8x1xf32>
    %c0_15 = arith.constant 0 : index
    %20 = memref.load %arg7[%c0_15] : memref<1xf32, #tpu.memory_space<smem>>
    %21 = vector.broadcast %20 : f32 to vector<8x1xf32>
    %22 = arith.addf %19, %21 : vector<8x1xf32>
    %c0_16 = arith.constant 0 : index
    %c0_17 = arith.constant 0 : index
    %23 = vector.load %arg8[%c0_16, %c0_17] : memref<8x1xf32, #tpu.memory_space<vmem>>, vector<8x1xf32>
    tpu.vector_store %arg8[%c0_16, %c0_17], %22 {strides = array<i32>} : memref<8x1xf32, #tpu.memory_space<vmem>>, vector<8x1xf32>,
    return
  }
  func.func @transform_0(%arg0: i32) -> (i32, i32) {
    %c0_i32 = arith.constant 0 : i32
    %c0_i32_0 = arith.constant 0 : i32
    return %arg0, %c0_i32 : i32, i32
  }
  func.func @transform_1(%arg0: i32) -> (i32, i32) {
    %c0_i32 = arith.constant 0 : i32
    %c0_i32_0 = arith.constant 0 : i32
    return %arg0, %c0_i32 : i32, i32
  }
  func.func @transform_2(%arg0: i32) -> (i32, i32) {
    %c0_i32 = arith.constant 0 : i32
    %c0_i32_0 = arith.constant 0 : i32
    %c0_i32_1 = arith.constant 0 : i32
    return %c0_i32, %c0_i32_0 : i32, i32
  }
  func.func @transform_3(%arg0: i32) -> (i32, i32) {
    %c0_i32 = arith.constant 0 : i32
    %c0_i32_0 = arith.constant 0 : i32
    %c0_i32_1 = arith.constant 0 : i32
    return %c0_i32, %c0_i32_0 : i32, i32
  }
  func.func @transform_4(%arg0: i32) -> (i32, i32) {
    %c0_i32 = arith.constant 0 : i32
    %c0_i32_0 = arith.constant 0 : i32
    %c0_i32_1 = arith.constant 0 : i32
    return %c0_i32, %c0_i32_0 : i32, i32
  }
  func.func @transform_5(%arg0: i32) -> (i32, i32) {
    %c0_i32 = arith.constant 0 : i32
    %c0_i32_0 = arith.constant 0 : i32
    %c0_i32_1 = arith.constant 0 : i32
    return %c0_i32, %c0_i32_0 : i32, i32
  }
  func.func @transform_6(%arg0: i32) -> i32 {
    %c0_i32 = arith.constant 0 : i32
    %c0_i32_0 = arith.constant 0 : i32
    return %c0_i32 : i32
  }
  func.func @transform_7(%arg0: i32) -> (i32, i32) {
    %c0_i32 = arith.constant 0 : i32
    %c0_i32_0 = arith.constant 0 : i32
    return %arg0, %c0_i32 : i32, i32
  }
}

</mosaic_0001>

<llo_original>
// kernel: tpu_custom_call.1
$region0: #{tpu_custom_call.1}
  #allocation0 [shape = 'u32[]', space=smem, size = 0x4, offset = 0x4, fixed_abs, tag = 'smem constant byte address 0x4 - core index']
  #allocation1 [shape = 'u32[144,128]{1,0:T(1,128)}', space=vmem, size = 0x12000, scoped, tag = 'internal scratch']
  #allocation2 [shape = 'f32[1]{0:T(128)S(6)}', space=smem, size = 0x200, scoped, tag = 'scoped memory for tpu_custom_call.1']
  %s0 = inlined_call_operand.hbm [shape: f32[8,32], index: 0, kind: input, shape index: {}]
  %s1 = inlined_call_operand.hbm [shape: f32[8,16], index: 1, kind: input, shape index: {}]
  %s2 = inlined_call_operand.hbm [shape: f32[32,1024], index: 2, kind: input, shape index: {}]
  %s3 = inlined_call_operand.hbm [shape: f32[16,1024], index: 3, kind: input, shape index: {}]
  %s4 = inlined_call_operand.vmem [shape: f32[1,1024], index: 4, kind: input, shape index: {}]
  %s5 = inlined_call_operand.hbm [shape: f32[1,1024], index: 5, kind: input, shape index: {}]
  %s6 = inlined_call_operand.<no memory space> [shape: f32[1], index: 6, kind: input, shape index: {}]
  %s7 = inlined_call_operand.vmem [shape: f32[8,1], index: 7, kind: output, shape index: {}]
  %s8 = sld [smem:[#allocation0]]
  $region58: #{tpu_custom_call.1} parent=0
    _
  %s10 = ssub.s32 1, %s8
  %s11 = scalar_select 0, %s10, %s8
  %12 = sst [smem:[#allocation2]] %s6
  $region1: #{tpu_custom_call.1} parent=0
    #allocation3 [shape = 'u8[4096]{0}', space=vmem, size = 0x1000, scoped, tag = 'input window, operand 0, single buffered']
    #allocation4 [shape = 's32[1]{0}', space=sflag, size = 0x4, scoped, tag = 'scoped memory for tpu_custom_call.1']
    #allocation5 [shape = 'u8[4096]{0}', space=vmem, size = 0x1000, scoped, tag = 'input window, operand 1, single buffered']
    #allocation6 [shape = 's32[1]{0}', space=sflag, size = 0x4, scoped, tag = 'scoped memory for tpu_custom_call.1']
    #allocation7 [shape = 'u8[131072]{0}', space=vmem, size = 0x20000, scoped, tag = 'input window, operand 2, single buffered']
    #allocation8 [shape = 'u8[65536]{0}', space=vmem, size = 0x10000, scoped, tag = 'input window, operand 3, single buffered']
    #allocation9 [shape = 's32[1]{0}', space=sflag, size = 0x4, scoped, tag = 'scoped memory for tpu_custom_call.1']
    #allocation10 [shape = 'u8[4096]{0}', space=vmem, size = 0x1000, scoped, tag = 'input window, operand 5, single buffered']
    %13 = vsyncpa [#allocation4], 0
    %14 = vsyncpa [#allocation6], 0
    %15 = vsyncpa [#allocation9], 0
    // Predicated region
    $region2: #{tpu_custom_call.1} parent=1 // pred_check
      _
    $region3: #{tpu_custom_call.1} parent=1 // pred_check_branch
      %17 = sbr.rel (0) target = $region5
    $region4: #{tpu_custom_call.1} parent=1 // pred_region
      %s19 = ssub.s32 128, 128
      %20 = vsyncadd [#allocation4], %s19
      %s22 = sshll.u32 [#allocation3], 4
      %s23 = int_to_ptr.vmem [resolvable:$true] %s22
      %25 = dma.hbm_to_vmem [thread:$0]  %s0, 128, %s23, [#allocation4]
    $region5: #{tpu_custom_call.1} parent=1 // pred_fallthru
      _
    // Predicated region
    $region6: #{tpu_custom_call.1} parent=1 // pred_check
      _
    $region7: #{tpu_custom_call.1} parent=1 // pred_check_branch
      %27 = sbr.rel (0) target = $region9
    $region8: #{tpu_custom_call.1} parent=1 // pred_region
      %s29 = ssub.s32 128, 128
      %30 = vsyncadd [#allocation6], %s29
      %s32 = sshll.u32 [#allocation5], 4
      %s33 = int_to_ptr.vmem [resolvable:$true] %s32
      %35 = dma.hbm_to_vmem [thread:$0]  %s1, 128, %s33, [#allocation6]
    $region9: #{tpu_custom_call.1} parent=1 // pred_fallthru
      _
    // Predicated region
    $region10: #{tpu_custom_call.1} parent=1 // pred_check
      _
    $region11: #{tpu_custom_call.1} parent=1 // pred_check_branch
      %37 = sbr.rel (0) target = $region13
    $region12: #{tpu_custom_call.1} parent=1 // pred_region
      %s39 = ssub.s32 4096, 4096
      %40 = vsyncadd [#allocation6], %s39
      %s41 = sshll.u32 [#allocation7], 4
      %s42 = int_to_ptr.vmem [resolvable:$true] %s41
      %47 = dma.hbm_to_vmem [thread:$0]  %s2, 4096, %s42, [#allocation6], 1024, 1024, 64
    $region13: #{tpu_custom_call.1} parent=1 // pred_fallthru
      _
    // Predicated region
    $region14: #{tpu_custom_call.1} parent=1 // pred_check
      _
    $region15: #{tpu_custom_call.1} parent=1 // pred_check_branch
      %49 = sbr.rel (0) target = $region17
    $region16: #{tpu_custom_call.1} parent=1 // pred_region
      %s51 = ssub.s32 2048, 2048
      %52 = vsyncadd [#allocation9], %s51
      %s53 = sshll.u32 [#allocation8], 4
      %s54 = int_to_ptr.vmem [resolvable:$true] %s53
      %59 = dma.hbm_to_vmem [thread:$0]  %s3, 2048, %s54, [#allocation9], 1024, 1024, 64
    $region17: #{tpu_custom_call.1} parent=1 // pred_fallthru
      _
    // Predicated region
    $region18: #{tpu_custom_call.1} parent=1 // pred_check
      _
    $region19: #{tpu_custom_call.1} parent=1 // pred_check_branch
      %61 = sbr.rel (0) target = $region21
    $region20: #{tpu_custom_call.1} parent=1 // pred_region
      _
    $region21: #{tpu_custom_call.1} parent=1 // pred_fallthru
      _
    // Predicated region
    $region22: #{tpu_custom_call.1} parent=1 // pred_check
      _
    $region23: #{tpu_custom_call.1} parent=1 // pred_check_branch
      %63 = sbr.rel (0) target = $region25
    $region24: #{tpu_custom_call.1} parent=1 // pred_region
      %s65 = ssub.s32 128, 128
      %66 = vsyncadd [#allocation9], %s65
      %s68 = sshll.u32 [#allocation10], 4
      %s69 = int_to_ptr.vmem [resolvable:$true] %s68
      %71 = dma.hbm_to_vmem [thread:$0]  %s5, 128, %s69, [#allocation9]
    $region25: #{tpu_custom_call.1} parent=1 // pred_fallthru
      _
    // Predicated region
    $region26: #{tpu_custom_call.1} parent=1 // pred_check
      _
    $region27: #{tpu_custom_call.1} parent=1 // pred_check_branch
      %73 = sbr.rel (0) target = $region29
    $region28: #{tpu_custom_call.1} parent=1 // pred_region
      _
    $region29: #{tpu_custom_call.1} parent=1 // pred_fallthru
      _
    // Predicated region
    $region30: #{tpu_custom_call.1} parent=1 // pred_check
      _
    $region31: #{tpu_custom_call.1} parent=1 // pred_check_branch
      %75 = sbr.rel (0) target = $region33
    $region32: #{tpu_custom_call.1} parent=1 // pred_region
      %76 = dma.done [#allocation4], 128
    $region33: #{tpu_custom_call.1} parent=1 // pred_fallthru
      _
    // Predicated region
    $region34: #{tpu_custom_call.1} parent=1 // pred_check
      _
    $region35: #{tpu_custom_call.1} parent=1 // pred_check_branch
      %78 = sbr.rel (0) target = $region37
    $region36: #{tpu_custom_call.1} parent=1 // pred_region
      %79 = dma.done [#allocation6], 128
    $region37: #{tpu_custom_call.1} parent=1 // pred_fallthru
      _
    // Predicated region
    $region38: #{tpu_custom_call.1} parent=1 // pred_check
      _
    $region39: #{tpu_custom_call.1} parent=1 // pred_check_branch
      %81 = sbr.rel (0) target = $region41
    $region40: #{tpu_custom_call.1} parent=1 // pred_region
      %82 = dma.done [#allocation6], 4096
    $region41: #{tpu_custom_call.1} parent=1 // pred_fallthru
      _
    // Predicated region
    $region42: #{tpu_custom_call.1} parent=1 // pred_check
      _
    $region43: #{tpu_custom_call.1} parent=1 // pred_check_branch
      %84 = sbr.rel (0) target = $region45
    $region44: #{tpu_custom_call.1} parent=1 // pred_region
      %85 = dma.done [#allocation9], 2048
    $region45: #{tpu_custom_call.1} parent=1 // pred_fallthru
      _
    // Predicated region
    $region46: #{tpu_custom_call.1} parent=1 // pred_check
      _
    $region47: #{tpu_custom_call.1} parent=1 // pred_check_branch
      %87 = sbr.rel (0) target = $region49
    $region48: #{tpu_custom_call.1} parent=1 // pred_region
      %88 = dma.done [#allocation9], 128
    $region49: #{tpu_custom_call.1} parent=1 // pred_fallthru
      _
    %v89 = vld [vmem:[#allocation3] sm:$0xff]
    %v90 = vld [vmem:[#allocation7] sm:$0xff]
    %v91 = vld [vmem:[#allocation7 + $0x8] sm:$0xff]
    %v92 = vld [vmem:[#allocation7 + $0x10] sm:$0xff]
    %v93 = vld [vmem:[#allocation7 + $0x18] sm:$0xff]
    %v94 = vld [vmem:[#allocation7 + $0x20] sm:$0xff]
    %v95 = vld [vmem:[#allocation7 + $0x28] sm:$0xff]
    %v96 = vld [vmem:[#allocation7 + $0x30] sm:$0xff]
    %v97 = vld [vmem:[#allocation7 + $0x38] sm:$0xff]
    %v98 = vld [vmem:[#allocation7 + $0x40] sm:$0xff]
    %v99 = vld [vmem:[#allocation7 + $0x48] sm:$0xff]
    %v100 = vld [vmem:[#allocation7 + $0x50] sm:$0xff]
    %v101 = vld [vmem:[#allocation7 + $0x58] sm:$0xff]
    %v102 = vld [vmem:[#allocation7 + $0x60] sm:$0xff]
    %v103 = vld [vmem:[#allocation7 + $0x68] sm:$0xff]
    %v104 = vld [vmem:[#allocation7 + $0x70] sm:$0xff]
    %v105 = vld [vmem:[#allocation7 + $0x78] sm:$0xff]
    %v106 = vld [vmem:[#allocation7 + $0x80] sm:$0xff]
    %v107 = vld [vmem:[#allocation7 + $0x88] sm:$0xff]
    %v108 = vld [vmem:[#allocation7 + $0x90] sm:$0xff]
    %v109 = vld [vmem:[#allocation7 + $0x98] sm:$0xff]
    %v110 = vld [vmem:[#allocation7 + $0xa0] sm:$0xff]
    %v111 = vld [vmem:[#allocation7 + $0xa8] sm:$0xff]
    %v112 = vld [vmem:[#allocation7 + $0xb0] sm:$0xff]
    %v113 = vld [vmem:[#allocation7 + $0xb8] sm:$0xff]
    %v114 = vld [vmem:[#allocation7 + $0xc0] sm:$0xff]
    %v115 = vld [vmem:[#allocation7 + $0xc8] sm:$0xff]
    %v116 = vld [vmem:[#allocation7 + $0xd0] sm:$0xff]
    %v117 = vld [vmem:[#allocation7 + $0xd8] sm:$0xff]
    %v118 = vld [vmem:[#allocation7 + $0xe0] sm:$0xff]
    %v119 = vld [vmem:[#allocation7 + $0xe8] sm:$0xff]
    %v120 = vld [vmem:[#allocation7 + $0xf0] sm:$0xff]
    %v121 = vld [vmem:[#allocation7 + $0xf8] sm:$0xff]
    %v122 = vld [vmem:[#allocation5] sm:$0xff]
    %v123 = vld [vmem:[#allocation8] sm:$0xff]
    %v124 = vld [vmem:[#allocation8 + $0x8] sm:$0xff]
    %v125 = vld [vmem:[#allocation8 + $0x10] sm:$0xff]
    %v126 = vld [vmem:[#allocation8 + $0x18] sm:$0xff]
    %v127 = vld [vmem:[#allocation8 + $0x20] sm:$0xff]
    %v128 = vld [vmem:[#allocation8 + $0x28] sm:$0xff]
    %v129 = vld [vmem:[#allocation8 + $0x30] sm:$0xff]
    %v130 = vld [vmem:[#allocation8 + $0x38] sm:$0xff]
    %v131 = vld [vmem:[#allocation8 + $0x40] sm:$0xff]
    %v132 = vld [vmem:[#allocation8 + $0x48] sm:$0xff]
    %v133 = vld [vmem:[#allocation8 + $0x50] sm:$0xff]
    %v134 = vld [vmem:[#allocation8 + $0x58] sm:$0xff]
    %v135 = vld [vmem:[#allocation8 + $0x60] sm:$0xff]
    %v136 = vld [vmem:[#allocation8 + $0x68] sm:$0xff]
    %v137 = vld [vmem:[#allocation8 + $0x70] sm:$0xff]
    %v138 = vld [vmem:[#allocation8 + $0x78] sm:$0xff]
    %vm139 = vcmask 130048
    %v141 = vsel %vm139, %v122, 0
    %143 = vmatprep.subr.mxu0 0.0
    %144 = vmatpush1.msra.mxu0 0.0
    %145 = vmatprep.subr.mxu0 0.0
    %146 = vmatpush1.msra.mxu0 0.0
    %147 = vmatprep.subr.mxu0 0.0
    %148 = vmatpush1.msra.mxu0 0.0
    %149 = vmatprep.subr.mxu0 0.0
    %150 = vmatpush1.msra.mxu0 0.0
    %151 = vmatprep.subr.mxu0 0.0
    %152 = vmatpush1.msra.mxu0 0.0
    %153 = vmatprep.subr.mxu0 0.0
    %154 = vmatpush1.msra.mxu0 0.0
    %155 = vmatprep.subr.mxu0 0.0
    %156 = vmatpush1.msra.mxu0 0.0
    %157 = vmatprep.subr.mxu0 0.0
    %158 = vmatpush1.msra.mxu0 0.0
    %159 = vmatprep.subr.mxu0 0.0
    %160 = vmatpush1.msra.mxu0 0.0
    %161 = vmatprep.subr.mxu0 0.0
    %162 = vmatpush1.msra.mxu0 0.0
    %163 = vmatprep.subr.mxu0 0.0
    %164 = vmatpush1.msra.mxu0 0.0
    %165 = vmatprep.subr.mxu0 0.0
    %166 = vmatpush1.msra.mxu0 0.0
    %167 = vmatprep.subr.mxu0 0.0
    %168 = vmatpush1.msra.mxu0 0.0
    %169 = vmatprep.subr.mxu0 0.0
    %170 = vmatpush1.msra.mxu0 0.0
    %171 = vmatprep.subr.mxu0 %v132
    %172 = vmatpush1.msra.mxu0 %v131
    %173 = vmatprep.subr.mxu0 %v124
    %174 = vmatpush1.msra.mxu0 %v123
    %175 = vmatprep.subr.mxu0 0.0
    %176 = vmatpush2.msra.mxu0 0.0
    %177 = vmatprep.subr.mxu0 0.0
    %178 = vmatpush2.msra.mxu0 0.0
    %179 = vmatprep.subr.mxu0 0.0
    %180 = vmatpush2.msra.mxu0 0.0
    %181 = vmatprep.subr.mxu0 0.0
    %182 = vmatpush2.msra.mxu0 0.0
    %183 = vmatprep.subr.mxu0 0.0
    %184 = vmatpush2.msra.mxu0 0.0
    %185 = vmatprep.subr.mxu0 0.0
    %186 = vmatpush2.msra.mxu0 0.0
    %187 = vmatprep.subr.mxu0 0.0
    %188 = vmatpush2.msra.mxu0 0.0
    %189 = vmatprep.subr.mxu0 0.0
    %190 = vmatpush2.msra.mxu0 0.0
    %191 = vmatprep.subr.mxu0 0.0
    %192 = vmatpush2.msra.mxu0 0.0
    %193 = vmatprep.subr.mxu0 0.0
    %194 = vmatpush2.msra.mxu0 0.0
    %195 = vmatprep.subr.mxu0 0.0
    %196 = vmatpush2.msra.mxu0 0.0
    %197 = vmatprep.subr.mxu0 0.0
    %198 = vmatpush2.msra.mxu0 0.0
    %199 = vmatprep.subr.mxu0 0.0
    %200 = vmatpush2.msra.mxu0 0.0
    %201 = vmatprep.subr.mxu0 0.0
    %202 = vmatpush2.msra.mxu0 0.0
    %203 = vmatprep.subr.mxu0 0.0
    %204 = vmatpush2.msra.mxu0 0.0
    %205 = vmatprep.subr.mxu0 0.0
    %206 = vmatpush2.msra.mxu0 0.0
    %207 = vmatprep.mubr.f32.mxu0 0.0
    %208 = vmatmul.mubr.f32.gmra.mxu0 %v141
    %v209 = vpop.f32.mrf.mxu0
    %v210 = vadd.f32 0.0, %v209
    %v211 = vpop.f32.mrf.mxu0
    %v212 = vadd.f32 0.0, %v211
    %213 = vdwg.mxu0
    %214 = vmatprep.subr.mxu0 0.0
    %215 = vmatpush1.msra.mxu0 0.0
    %216 = vmatprep.subr.mxu0 0.0
    %217 = vmatpush1.msra.mxu0 0.0
    %218 = vmatprep.subr.mxu0 0.0
    %219 = vmatpush1.msra.mxu0 0.0
    %220 = vmatprep.subr.mxu0 0.0
    %221 = vmatpush1.msra.mxu0 0.0
    %222 = vmatprep.subr.mxu0 0.0
    %223 = vmatpush1.msra.mxu0 0.0
    %224 = vmatprep.subr.mxu0 0.0
    %225 = vmatpush1.msra.mxu0 0.0
    %226 = vmatprep.subr.mxu0 0.0
    %227 = vmatpush1.msra.mxu0 0.0
    %228 = vmatprep.subr.mxu0 0.0
    %229 = vmatpush1.msra.mxu0 0.0
    %230 = vmatprep.subr.mxu0 0.0
    %231 = vmatpush1.msra.mxu0 0.0
    %232 = vmatprep.subr.mxu0 0.0
    %233 = vmatpush1.msra.mxu0 0.0
    %234 = vmatprep.subr.mxu0 0.0
    %235 = vmatpush1.msra.mxu0 0.0
    %236 = vmatprep.subr.mxu0 0.0
    %237 = vmatpush1.msra.mxu0 0.0
    %238 = vmatprep.subr.mxu0 0.0
    %239 = vmatpush1.msra.mxu0 0.0
    %240 = vmatprep.subr.mxu0 0.0
    %241 = vmatpush1.msra.mxu0 0.0
    %242 = vmatprep.subr.mxu0 %v134
    %243 = vmatpush1.msra.mxu0 %v133
    %244 = vmatprep.subr.mxu0 %v126
    %245 = vmatpush1.msra.mxu0 %v125
    %246 = vmatprep.subr.mxu0 0.0
    %247 = vmatpush2.msra.mxu0 0.0
    %248 = vmatprep.subr.mxu0 0.0
    %249 = vmatpush2.msra.mxu0 0.0
    %250 = vmatprep.subr.mxu0 0.0
    %251 = vmatpush2.msra.mxu0 0.0
    %252 = vmatprep.subr.mxu0 0.0
    %253 = vmatpush2.msra.mxu0 0.0
    %254 = vmatprep.subr.mxu0 0.0
    %255 = vmatpush2.msra.mxu0 0.0
    %256 = vmatprep.subr.mxu0 0.0
    %257 = vmatpush2.msra.mxu0 0.0
    %258 = vmatprep.subr.mxu0 0.0
    %259 = vmatpush2.msra.mxu0 0.0
    %260 = vmatprep.subr.mxu0 0.0
    %261 = vmatpush2.msra.mxu0 0.0
    %262 = vmatprep.subr.mxu0 0.0
    %263 = vmatpush2.msra.mxu0 0.0
    %264 = vmatprep.subr.mxu0 0.0
    %265 = vmatpush2.msra.mxu0 0.0
    %266 = vmatprep.subr.mxu0 0.0
    %267 = vmatpush2.msra.mxu0 0.0
    %268 = vmatprep.subr.mxu0 0.0
    %269 = vmatpush2.msra.mxu0 0.0
    %270 = vmatprep.subr.mxu0 0.0
    %271 = vmatpush2.msra.mxu0 0.0
    %272 = vmatprep.subr.mxu0 0.0
    %273 = vmatpush2.msra.mxu0 0.0
    %274 = vmatprep.subr.mxu0 0.0
    %275 = vmatpush2.msra.mxu0 0.0
    %276 = vmatprep.subr.mxu0 0.0
    %277 = vmatpush2.msra.mxu0 0.0
    %278 = vmatprep.mubr.f32.mxu0 0.0
    %279 = vmatmul.mubr.f32.gmra.mxu0 %v141
    %v280 = vpop.f32.mrf.mxu0
    %v281 = vadd.f32 0.0, %v280
    %v282 = vpop.f32.mrf.mxu0
    %v283 = vadd.f32 0.0, %v282
    %284 = vdwg.mxu0
    %285 = vmatprep.subr.mxu0 0.0
    %286 = vmatpush1.msra.mxu0 0.0
    %287 = vmatprep.subr.mxu0 0.0
    %288 = vmatpush1.msra.mxu0 0.0
    %289 = vmatprep.subr.mxu0 0.0
    %290 = vmatpush1.msra.mxu0 0.0
    %291 = vmatprep.subr.mxu0 0.0
    %292 = vmatpush1.msra.mxu0 0.0
    %293 = vmatprep.subr.mxu0 0.0
    %294 = vmatpush1.msra.mxu0 0.0
    %295 = vmatprep.subr.mxu0 0.0
    %296 = vmatpush1.msra.mxu0 0.0
    %297 = vmatprep.subr.mxu0 0.0
    %298 = vmatpush1.msra.mxu0 0.0
    %299 = vmatprep.subr.mxu0 0.0
    %300 = vmatpush1.msra.mxu0 0.0
    %301 = vmatprep.subr.mxu0 0.0
    %302 = vmatpush1.msra.mxu0 0.0
    %303 = vmatprep.subr.mxu0 0.0
    %304 = vmatpush1.msra.mxu0 0.0
    %305 = vmatprep.subr.mxu0 0.0
    %306 = vmatpush1.msra.mxu0 0.0
    %307 = vmatprep.subr.mxu0 0.0
    %308 = vmatpush1.msra.mxu0 0.0
    %309 = vmatprep.subr.mxu0 0.0
    %310 = vmatpush1.msra.mxu0 0.0
    %311 = vmatprep.subr.mxu0 0.0
    %312 = vmatpush1.msra.mxu0 0.0
    %313 = vmatprep.subr.mxu0 %v136
    %314 = vmatpush1.msra.mxu0 %v135
    %315 = vmatprep.subr.mxu0 %v128
    %316 = vmatpush1.msra.mxu0 %v127
    %317 = vmatprep.subr.mxu0 0.0
    %318 = vmatpush2.msra.mxu0 0.0
    %319 = vmatprep.subr.mxu0 0.0
    %320 = vmatpush2.msra.mxu0 0.0
    %321 = vmatprep.subr.mxu0 0.0
    %322 = vmatpush2.msra.mxu0 0.0
    %323 = vmatprep.subr.mxu0 0.0
    %324 = vmatpush2.msra.mxu0 0.0
    %325 = vmatprep.subr.mxu0 0.0
    %326 = vmatpush2.msra.mxu0 0.0
    %327 = vmatprep.subr.mxu0 0.0
    %328 = vmatpush2.msra.mxu0 0.0
    %329 = vmatprep.subr.mxu0 0.0
    %330 = vmatpush2.msra.mxu0 0.0
    %331 = vmatprep.subr.mxu0 0.0
    %332 = vmatpush2.msra.mxu0 0.0
    %333 = vmatprep.subr.mxu0 0.0
    %334 = vmatpush2.msra.mxu0 0.0
    %335 = vmatprep.subr.mxu0 0.0
    %336 = vmatpush2.msra.mxu0 0.0
    %337 = vmatprep.subr.mxu0 0.0
    %338 = vmatpush2.msra.mxu0 0.0
    %339 = vmatprep.subr.mxu0 0.0
    %340 = vmatpush2.msra.mxu0 0.0
    %341 = vmatprep.subr.mxu0 0.0
    %342 = vmatpush2.msra.mxu0 0.0
    %343 = vmatprep.subr.mxu0 0.0
    %344 = vmatpush2.msra.mxu0 0.0
    %345 = vmatprep.subr.mxu0 0.0
    %346 = vmatpush2.msra.mxu0 0.0
    %347 = vmatprep.subr.mxu0 0.0
    %348 = vmatpush2.msra.mxu0 0.0
    %349 = vmatprep.mubr.f32.mxu0 0.0
    %350 = vmatmul.mubr.f32.gmra.mxu0 %v141
    %v351 = vpop.f32.mrf.mxu0
    %v352 = vadd.f32 0.0, %v351
    %v353 = vpop.f32.mrf.mxu0
    %v354 = vadd.f32 0.0, %v353
    %355 = vdwg.mxu0
    %356 = vmatprep.subr.mxu0 0.0
    %357 = vmatpush1.msra.mxu0 0.0
    %358 = vmatprep.subr.mxu0 0.0
    %359 = vmatpush1.msra.mxu0 0.0
    %360 = vmatprep.subr.mxu0 0.0
    %361 = vmatpush1.msra.mxu0 0.0
    %362 = vmatprep.subr.mxu0 0.0
    %363 = vmatpush1.msra.mxu0 0.0
    %364 = vmatprep.subr.mxu0 0.0
    %365 = vmatpush1.msra.mxu0 0.0
    %366 = vmatprep.subr.mxu0 0.0
    %367 = vmatpush1.msra.mxu0 0.0
    %368 = vmatprep.subr.mxu0 0.0
    %369 = vmatpush1.msra.mxu0 0.0
    %370 = vmatprep.subr.mxu0 0.0
    %371 = vmatpush1.msra.mxu0 0.0
    %372 = vmatprep.subr.mxu0 0.0
    %373 = vmatpush1.msra.mxu0 0.0
    %374 = vmatprep.subr.mxu0 0.0
    %375 = vmatpush1.msra.mxu0 0.0
    %376 = vmatprep.subr.mxu0 0.0
    %377 = vmatpush1.msra.mxu0 0.0
    %378 = vmatprep.subr.mxu0 0.0
    %379 = vmatpush1.msra.mxu0 0.0
    %380 = vmatprep.subr.mxu0 0.0
    %381 = vmatpush1.msra.mxu0 0.0
    %382 = vmatprep.subr.mxu0 0.0
    %383 = vmatpush1.msra.mxu0 0.0
    %384 = vmatprep.subr.mxu0 %v138
    %385 = vmatpush1.msra.mxu0 %v137
    %386 = vmatprep.subr.mxu0 %v130
    %387 = vmatpush1.msra.mxu0 %v129
    %388 = vmatprep.subr.mxu0 0.0
    %389 = vmatpush2.msra.mxu0 0.0
    %390 = vmatprep.subr.mxu0 0.0
    %391 = vmatpush2.msra.mxu0 0.0
    %392 = vmatprep.subr.mxu0 0.0
    %393 = vmatpush2.msra.mxu0 0.0
    %394 = vmatprep.subr.mxu0 0.0
    %395 = vmatpush2.msra.mxu0 0.0
    %396 = vmatprep.subr.mxu0 0.0
    %397 = vmatpush2.msra.mxu0 0.0
    %398 = vmatprep.subr.mxu0 0.0
    %399 = vmatpush2.msra.mxu0 0.0
    %400 = vmatprep.subr.mxu0 0.0
    %401 = vmatpush2.msra.mxu0 0.0
    %402 = vmatprep.subr.mxu0 0.0
    %403 = vmatpush2.msra.mxu0 0.0
    %404 = vmatprep.subr.mxu0 0.0
    %405 = vmatpush2.msra.mxu0 0.0
    %406 = vmatprep.subr.mxu0 0.0
    %407 = vmatpush2.msra.mxu0 0.0
    %408 = vmatprep.subr.mxu0 0.0
    %409 = vmatpush2.msra.mxu0 0.0
    %410 = vmatprep.subr.mxu0 0.0
    %411 = vmatpush2.msra.mxu0 0.0
    %412 = vmatprep.subr.mxu0 0.0
    %413 = vmatpush2.msra.mxu0 0.0
    %414 = vmatprep.subr.mxu0 0.0
    %415 = vmatpush2.msra.mxu0 0.0
    %416 = vmatprep.subr.mxu0 0.0
    %417 = vmatpush2.msra.mxu0 0.0
    %418 = vmatprep.subr.mxu0 0.0
    %419 = vmatpush2.msra.mxu0 0.0
    %420 = vmatprep.mubr.f32.mxu0 0.0
    %421 = vmatmul.mubr.f32.gmra.mxu0 %v141
    %v422 = vpop.f32.mrf.mxu0
    %v423 = vadd.f32 0.0, %v422
    %v424 = vpop.f32.mrf.mxu0
    %v425 = vadd.f32 0.0, %v424
    %426 = vdwg.mxu0
    %vm427 = vcmask 261120
    %v429 = vsel %vm427, %v89, 0
    %431 = vmatprep.subr.mxu0 0.0
    %432 = vmatpush1.msra.mxu0 0.0
    %433 = vmatprep.subr.mxu0 0.0
    %434 = vmatpush1.msra.mxu0 0.0
    %435 = vmatprep.subr.mxu0 0.0
    %436 = vmatpush1.msra.mxu0 0.0
    %437 = vmatprep.subr.mxu0 0.0
    %438 = vmatpush1.msra.mxu0 0.0
    %439 = vmatprep.subr.mxu0 0.0
    %440 = vmatpush1.msra.mxu0 0.0
    %441 = vmatprep.subr.mxu0 0.0
    %442 = vmatpush1.msra.mxu0 0.0
    %443 = vmatprep.subr.mxu0 0.0
    %444 = vmatpush1.msra.mxu0 0.0
    %445 = vmatprep.subr.mxu0 0.0
    %446 = vmatpush1.msra.mxu0 0.0
    %447 = vmatprep.subr.mxu0 0.0
    %448 = vmatpush1.msra.mxu0 0.0
    %449 = vmatprep.subr.mxu0 0.0
    %450 = vmatpush1.msra.mxu0 0.0
    %451 = vmatprep.subr.mxu0 0.0
    %452 = vmatpush1.msra.mxu0 0.0
    %453 = vmatprep.subr.mxu0 0.0
    %454 = vmatpush1.msra.mxu0 0.0
    %455 = vmatprep.subr.mxu0 %v115
    %456 = vmatpush1.msra.mxu0 %v114
    %457 = vmatprep.subr.mxu0 %v107
    %458 = vmatpush1.msra.mxu0 %v106
    %459 = vmatprep.subr.mxu0 %v99
    %460 = vmatpush1.msra.mxu0 %v98
    %461 = vmatprep.subr.mxu0 %v91
    %462 = vmatpush1.msra.mxu0 %v90
    %463 = vmatprep.subr.mxu0 0.0
    %464 = vmatpush2.msra.mxu0 0.0
    %465 = vmatprep.subr.mxu0 0.0
    %466 = vmatpush2.msra.mxu0 0.0
    %467 = vmatprep.subr.mxu0 0.0
    %468 = vmatpush2.msra.mxu0 0.0
    %469 = vmatprep.subr.mxu0 0.0
    %470 = vmatpush2.msra.mxu0 0.0
    %471 = vmatprep.subr.mxu0 0.0
    %472 = vmatpush2.msra.mxu0 0.0
    %473 = vmatprep.subr.mxu0 0.0
    %474 = vmatpush2.msra.mxu0 0.0
    %475 = vmatprep.subr.mxu0 0.0
    %476 = vmatpush2.msra.mxu0 0.0
    %477 = vmatprep.subr.mxu0 0.0
    %478 = vmatpush2.msra.mxu0 0.0
    %479 = vmatprep.subr.mxu0 0.0
    %480 = vmatpush2.msra.mxu0 0.0
    %481 = vmatprep.subr.mxu0 0.0
    %482 = vmatpush2.msra.mxu0 0.0
    %483 = vmatprep.subr.mxu0 0.0
    %484 = vmatpush2.msra.mxu0 0.0
    %485 = vmatprep.subr.mxu0 0.0
    %486 = vmatpush2.msra.mxu0 0.0
    %487 = vmatprep.subr.mxu0 0.0
    %488 = vmatpush2.msra.mxu0 0.0
    %489 = vmatprep.subr.mxu0 0.0
    %490 = vmatpush2.msra.mxu0 0.0
    %491 = vmatprep.subr.mxu0 0.0
    %492 = vmatpush2.msra.mxu0 0.0
    %493 = vmatprep.subr.mxu0 0.0
    %494 = vmatpush2.msra.mxu0 0.0
    %495 = vmatprep.mubr.f32.mxu0 0.0
    %496 = vmatmul.mubr.f32.gmra.mxu0 %v429
    %v497 = vpop.f32.mrf.mxu0
    %v498 = vadd.f32 %v210, %v497
    %v499 = vpop.f32.mrf.mxu0
    %v500 = vadd.f32 %v212, %v499
    %501 = vdwg.mxu0
    %502 = vmatprep.subr.mxu0 0.0
    %503 = vmatpush1.msra.mxu0 0.0
    %504 = vmatprep.subr.mxu0 0.0
    %505 = vmatpush1.msra.mxu0 0.0
    %506 = vmatprep.subr.mxu0 0.0
    %507 = vmatpush1.msra.mxu0 0.0
    %508 = vmatprep.subr.mxu0 0.0
    %509 = vmatpush1.msra.mxu0 0.0
    %510 = vmatprep.subr.mxu0 0.0
    %511 = vmatpush1.msra.mxu0 0.0
    %512 = vmatprep.subr.mxu0 0.0
    %513 = vmatpush1.msra.mxu0 0.0
    %514 = vmatprep.subr.mxu0 0.0
    %515 = vmatpush1.msra.mxu0 0.0
    %516 = vmatprep.subr.mxu0 0.0
    %517 = vmatpush1.msra.mxu0 0.0
    %518 = vmatprep.subr.mxu0 0.0
    %519 = vmatpush1.msra.mxu0 0.0
    %520 = vmatprep.subr.mxu0 0.0
    %521 = vmatpush1.msra.mxu0 0.0
    %522 = vmatprep.subr.mxu0 0.0
    %523 = vmatpush1.msra.mxu0 0.0
    %524 = vmatprep.subr.mxu0 0.0
    %525 = vmatpush1.msra.mxu0 0.0
    %526 = vmatprep.subr.mxu0 %v117
    %527 = vmatpush1.msra.mxu0 %v116
    %528 = vmatprep.subr.mxu0 %v109
    %529 = vmatpush1.msra.mxu0 %v108
    %530 = vmatprep.subr.mxu0 %v101
    %531 = vmatpush1.msra.mxu0 %v100
    %532 = vmatprep.subr.mxu0 %v93
    %533 = vmatpush1.msra.mxu0 %v92
    %534 = vmatprep.subr.mxu0 0.0
    %535 = vmatpush2.msra.mxu0 0.0
    %536 = vmatprep.subr.mxu0 0.0
    %537 = vmatpush2.msra.mxu0 0.0
    %538 = vmatprep.subr.mxu0 0.0
    %539 = vmatpush2.msra.mxu0 0.0
    %540 = vmatprep.subr.mxu0 0.0
    %541 = vmatpush2.msra.mxu0 0.0
    %542 = vmatprep.subr.mxu0 0.0
    %543 = vmatpush2.msra.mxu0 0.0
    %544 = vmatprep.subr.mxu0 0.0
    %545 = vmatpush2.msra.mxu0 0.0
    %546 = vmatprep.subr.mxu0 0.0
    %547 = vmatpush2.msra.mxu0 0.0
    %548 = vmatprep.subr.mxu0 0.0
    %549 = vmatpush2.msra.mxu0 0.0
    %550 = vmatprep.subr.mxu0 0.0
    %551 = vmatpush2.msra.mxu0 0.0
    %552 = vmatprep.subr.mxu0 0.0
    %553 = vmatpush2.msra.mxu0 0.0
    %554 = vmatprep.subr.mxu0 0.0
    %555 = vmatpush2.msra.mxu0 0.0
    %556 = vmatprep.subr.mxu0 0.0
    %557 = vmatpush2.msra.mxu0 0.0
    %558 = vmatprep.subr.mxu0 0.0
    %559 = vmatpush2.msra.mxu0 0.0
    %560 = vmatprep.subr.mxu0 0.0
    %561 = vmatpush2.msra.mxu0 0.0
    %562 = vmatprep.subr.mxu0 0.0
    %563 = vmatpush2.msra.mxu0 0.0
    %564 = vmatprep.subr.mxu0 0.0
    %565 = vmatpush2.msra.mxu0 0.0
    %566 = vmatprep.mubr.f32.mxu0 0.0
    %567 = vmatmul.mubr.f32.gmra.mxu0 %v429
    %v568 = vpop.f32.mrf.mxu0
    %v569 = vadd.f32 %v281, %v568
    %v570 = vpop.f32.mrf.mxu0
    %v571 = vadd.f32 %v283, %v570
    %572 = vdwg.mxu0
    %573 = vmatprep.subr.mxu0 0.0
    %574 = vmatpush1.msra.mxu0 0.0
    %575 = vmatprep.subr.mxu0 0.0
    %576 = vmatpush1.msra.mxu0 0.0
    %577 = vmatprep.subr.mxu0 0.0
    %578 = vmatpush1.msra.mxu0 0.0
    %579 = vmatprep.subr.mxu0 0.0
    %580 = vmatpush1.msra.mxu0 0.0
    %581 = vmatprep.subr.mxu0 0.0
    %582 = vmatpush1.msra.mxu0 0.0
    %583 = vmatprep.subr.mxu0 0.0
    %584 = vmatpush1.msra.mxu0 0.0
    %585 = vmatprep.subr.mxu0 0.0
    %586 = vmatpush1.msra.mxu0 0.0
    %587 = vmatprep.subr.mxu0 0.0
    %588 = vmatpush1.msra.mxu0 0.0
    %589 = vmatprep.subr.mxu0 0.0
    %590 = vmatpush1.msra.mxu0 0.0
    %591 = vmatprep.subr.mxu0 0.0
    %592 = vmatpush1.msra.mxu0 0.0
    %593 = vmatprep.subr.mxu0 0.0
    %594 = vmatpush1.msra.mxu0 0.0
    %595 = vmatprep.subr.mxu0 0.0
    %596 = vmatpush1.msra.mxu0 0.0
    %597 = vmatprep.subr.mxu0 %v119
    %598 = vmatpush1.msra.mxu0 %v118
    %599 = vmatprep.subr.mxu0 %v111
    %600 = vmatpush1.msra.mxu0 %v110
    %601 = vmatprep.subr.mxu0 %v103
    %602 = vmatpush1.msra.mxu0 %v102
    %603 = vmatprep.subr.mxu0 %v95
    %604 = vmatpush1.msra.mxu0 %v94
    %605 = vmatprep.subr.mxu0 0.0
    %606 = vmatpush2.msra.mxu0 0.0
    %607 = vmatprep.subr.mxu0 0.0
    %608 = vmatpush2.msra.mxu0 0.0
    %609 = vmatprep.subr.mxu0 0.0
    %610 = vmatpush2.msra.mxu0 0.0
    %611 = vmatprep.subr.mxu0 0.0
    %612 = vmatpush2.msra.mxu0 0.0
    %613 = vmatprep.subr.mxu0 0.0
    %614 = vmatpush2.msra.mxu0 0.0
    %615 = vmatprep.subr.mxu0 0.0
    %616 = vmatpush2.msra.mxu0 0.0
    %617 = vmatprep.subr.mxu0 0.0
    %618 = vmatpush2.msra.mxu0 0.0
    %619 = vmatprep.subr.mxu0 0.0
    %620 = vmatpush2.msra.mxu0 0.0
    %621 = vmatprep.subr.mxu0 0.0
    %622 = vmatpush2.msra.mxu0 0.0
    %623 = vmatprep.subr.mxu0 0.0
    %624 = vmatpush2.msra.mxu0 0.0
    %625 = vmatprep.subr.mxu0 0.0
    %626 = vmatpush2.msra.mxu0 0.0
    %627 = vmatprep.subr.mxu0 0.0
    %628 = vmatpush2.msra.mxu0 0.0
    %629 = vmatprep.subr.mxu0 0.0
    %630 = vmatpush2.msra.mxu0 0.0
    %631 = vmatprep.subr.mxu0 0.0
    %632 = vmatpush2.msra.mxu0 0.0
    %633 = vmatprep.subr.mxu0 0.0
    %634 = vmatpush2.msra.mxu0 0.0
    %635 = vmatprep.subr.mxu0 0.0
    %636 = vmatpush2.msra.mxu0 0.0
    %637 = vmatprep.mubr.f32.mxu0 0.0
    %638 = vmatmul.mubr.f32.gmra.mxu0 %v429
    %v639 = vpop.f32.mrf.mxu0
    %v640 = vadd.f32 %v352, %v639
    %v641 = vpop.f32.mrf.mxu0
    %v642 = vadd.f32 %v354, %v641
    %643 = vdwg.mxu0
    %644 = vmatprep.subr.mxu0 0.0
    %645 = vmatpush1.msra.mxu0 0.0
    %646 = vmatprep.subr.mxu0 0.0
    %647 = vmatpush1.msra.mxu0 0.0
    %648 = vmatprep.subr.mxu0 0.0
    %649 = vmatpush1.msra.mxu0 0.0
    %650 = vmatprep.subr.mxu0 0.0
    %651 = vmatpush1.msra.mxu0 0.0
    %652 = vmatprep.subr.mxu0 0.0
    %653 = vmatpush1.msra.mxu0 0.0
    %654 = vmatprep.subr.mxu0 0.0
    %655 = vmatpush1.msra.mxu0 0.0
    %656 = vmatprep.subr.mxu0 0.0
    %657 = vmatpush1.msra.mxu0 0.0
    %658 = vmatprep.subr.mxu0 0.0
    %659 = vmatpush1.msra.mxu0 0.0
    %660 = vmatprep.subr.mxu0 0.0
    %661 = vmatpush1.msra.mxu0 0.0
    %662 = vmatprep.subr.mxu0 0.0
    %663 = vmatpush1.msra.mxu0 0.0
    %664 = vmatprep.subr.mxu0 0.0
    %665 = vmatpush1.msra.mxu0 0.0
    %666 = vmatprep.subr.mxu0 0.0
    %667 = vmatpush1.msra.mxu0 0.0
    %668 = vmatprep.subr.mxu0 %v121
    %669 = vmatpush1.msra.mxu0 %v120
    %670 = vmatprep.subr.mxu0 %v113
    %671 = vmatpush1.msra.mxu0 %v112
    %672 = vmatprep.subr.mxu0 %v105
    %673 = vmatpush1.msra.mxu0 %v104
    %674 = vmatprep.subr.mxu0 %v97
    %675 = vmatpush1.msra.mxu0 %v96
    %676 = vmatprep.subr.mxu0 0.0
    %677 = vmatpush2.msra.mxu0 0.0
    %678 = vmatprep.subr.mxu0 0.0
    %679 = vmatpush2.msra.mxu0 0.0
    %680 = vmatprep.subr.mxu0 0.0
    %681 = vmatpush2.msra.mxu0 0.0
    %682 = vmatprep.subr.mxu0 0.0
    %683 = vmatpush2.msra.mxu0 0.0
    %684 = vmatprep.subr.mxu0 0.0
    %685 = vmatpush2.msra.mxu0 0.0
    %686 = vmatprep.subr.mxu0 0.0
    %687 = vmatpush2.msra.mxu0 0.0
    %688 = vmatprep.subr.mxu0 0.0
    %689 = vmatpush2.msra.mxu0 0.0
    %690 = vmatprep.subr.mxu0 0.0
    %691 = vmatpush2.msra.mxu0 0.0
    %692 = vmatprep.subr.mxu0 0.0
    %693 = vmatpush2.msra.mxu0 0.0
    %694 = vmatprep.subr.mxu0 0.0
    %695 = vmatpush2.msra.mxu0 0.0
    %696 = vmatprep.subr.mxu0 0.0
    %697 = vmatpush2.msra.mxu0 0.0
    %698 = vmatprep.subr.mxu0 0.0
    %699 = vmatpush2.msra.mxu0 0.0
    %700 = vmatprep.subr.mxu0 0.0
    %701 = vmatpush2.msra.mxu0 0.0
    %702 = vmatprep.subr.mxu0 0.0
    %703 = vmatpush2.msra.mxu0 0.0
    %704 = vmatprep.subr.mxu0 0.0
    %705 = vmatpush2.msra.mxu0 0.0
    %706 = vmatprep.subr.mxu0 0.0
    %707 = vmatpush2.msra.mxu0 0.0
    %708 = vmatprep.mubr.f32.mxu0 0.0
    %709 = vmatmul.mubr.f32.gmra.mxu0 %v429
    %v710 = vpop.f32.mrf.mxu0
    %v711 = vadd.f32 %v423, %v710
    %v712 = vpop.f32.mrf.mxu0
    %v713 = vadd.f32 %v425, %v712
    %714 = vdwg.mxu0
    %v715 = vld [vmem:[%s4] sm:$0xff]
    %v717 = vlaneseq
    %v718 = vshrl.u32 %v717, 7
    %v719 = vsub.s32 0, %v718
    %v720 = vrot.slane %v715, %v719
    %v721 = vlaneseq
    %v722 = vshrl.u32 %v721, 7
    %v723 = vsub.s32 1, %v722
    %v724 = vrot.slane %v715, %v723
    %v725 = vlaneseq
    %v726 = vshrl.u32 %v725, 7
    %v727 = vsub.s32 2, %v726
    %v728 = vrot.slane %v715, %v727
    %v729 = vlaneseq
    %v730 = vshrl.u32 %v729, 7
    %v731 = vsub.s32 3, %v730
    %v732 = vrot.slane %v715, %v731
    %v733 = vlaneseq
    %v734 = vshrl.u32 %v733, 7
    %v735 = vsub.s32 4, %v734
    %v736 = vrot.slane %v715, %v735
    %v737 = vlaneseq
    %v738 = vshrl.u32 %v737, 7
    %v739 = vsub.s32 5, %v738
    %v740 = vrot.slane %v715, %v739
    %v741 = vlaneseq
    %v742 = vshrl.u32 %v741, 7
    %v743 = vsub.s32 6, %v742
    %v744 = vrot.slane %v715, %v743
    %v745 = vlaneseq
    %v746 = vshrl.u32 %v745, 7
    %v747 = vsub.s32 7, %v746
    %v748 = vrot.slane %v715, %v747
    %v757 = vadd.f32 %v498, %v720
    %v758 = vadd.f32 %v500, %v724
    %v759 = vadd.f32 %v569, %v728
    %v760 = vadd.f32 %v571, %v732
    %v761 = vadd.f32 %v640, %v736
    %v762 = vadd.f32 %v642, %v740
    %v763 = vadd.f32 %v711, %v744
    %v764 = vadd.f32 %v713, %v748
    %vm765 = vcmp.gt.f32.partialorder %v757, 0.0
    %vm766 = vcmp.gt.f32.partialorder %v758, 0.0
    %vm767 = vcmp.gt.f32.partialorder %v759, 0.0
    %vm768 = vcmp.gt.f32.partialorder %v760, 0.0
    %vm769 = vcmp.gt.f32.partialorder %v761, 0.0
    %vm770 = vcmp.gt.f32.partialorder %v762, 0.0
    %vm771 = vcmp.gt.f32.partialorder %v763, 0.0
    %vm772 = vcmp.gt.f32.partialorder %v764, 0.0
    %v773 = vmul.f32 %v757, 0.2
    %v774 = vmul.f32 %v758, 0.2
    %v775 = vmul.f32 %v759, 0.2
    %v776 = vmul.f32 %v760, 0.2
    %v777 = vmul.f32 %v761, 0.2
    %v778 = vmul.f32 %v762, 0.2
    %v779 = vmul.f32 %v763, 0.2
    %v780 = vmul.f32 %v764, 0.2
    %v781 = vsel %vm765, %v757, %v773
    %v782 = vsel %vm766, %v758, %v774
    %v783 = vsel %vm767, %v759, %v775
    %v784 = vsel %vm768, %v760, %v776
    %v785 = vsel %vm769, %v761, %v777
    %v786 = vsel %vm770, %v762, %v778
    %v787 = vsel %vm771, %v763, %v779
    %v788 = vsel %vm772, %v764, %v780
    %v789 = vld [vmem:[#allocation10] sm:$0xff]
    %v791 = vlaneseq
    %v792 = vshrl.u32 %v791, 7
    %v793 = vsub.s32 0, %v792
    %v794 = vrot.slane %v789, %v793
    %v795 = vlaneseq
    %v796 = vshrl.u32 %v795, 7
    %v797 = vsub.s32 1, %v796
    %v798 = vrot.slane %v789, %v797
    %v799 = vlaneseq
    %v800 = vshrl.u32 %v799, 7
    %v801 = vsub.s32 2, %v800
    %v802 = vrot.slane %v789, %v801
    %v803 = vlaneseq
    %v804 = vshrl.u32 %v803, 7
    %v805 = vsub.s32 3, %v804
    %v806 = vrot.slane %v789, %v805
    %v807 = vlaneseq
    %v808 = vshrl.u32 %v807, 7
    %v809 = vsub.s32 4, %v808
    %v810 = vrot.slane %v789, %v809
    %v811 = vlaneseq
    %v812 = vshrl.u32 %v811, 7
    %v813 = vsub.s32 5, %v812
    %v814 = vrot.slane %v789, %v813
    %v815 = vlaneseq
    %v816 = vshrl.u32 %v815, 7
    %v817 = vsub.s32 6, %v816
    %v818 = vrot.slane %v789, %v817
    %v819 = vlaneseq
    %v820 = vshrl.u32 %v819, 7
    %v821 = vsub.s32 7, %v820
    %v822 = vrot.slane %v789, %v821
    %v831 = vmul.f32 %v781, %v794
    %v832 = vmul.f32 %v782, %v798
    %v833 = vmul.f32 %v783, %v802
    %v834 = vmul.f32 %v784, %v806
    %v835 = vmul.f32 %v785, %v810
    %v836 = vmul.f32 %v786, %v814
    %v837 = vmul.f32 %v787, %v818
    %v838 = vmul.f32 %v788, %v822
    %v839 = vadd.f32 %v831, %v832
    %v840 = vadd.f32 %v839, %v833
    %v841 = vadd.f32 %v840, %v834
    %v842 = vadd.f32 %v841, %v835
    %v843 = vadd.f32 %v842, %v836
    %v844 = vadd.f32 %v843, %v837
    %v845 = vadd.f32 %v844, %v838
    %846 = vadd.xlane.f32.xlu0 %v845
    %v847 = vpop.xlane.xlu0 %846
    %s848 = sld [smem:[#allocation2]]
    %v849 = vstv %s848
    %v850 = vadd.f32 %v847, %v849
    %vm851 = vcmask 7168
    %852 = vst.msk [vmem:[%s7] sm:$0xff] %vm851, %v850
    // Predicated region
    $region50: #{tpu_custom_call.1} parent=1 // pred_check
      _
    $region51: #{tpu_custom_call.1} parent=1 // pred_check_branch
      %854 = sbr.rel (0) target = $region53
    $region52: #{tpu_custom_call.1} parent=1 // pred_region
      _
    $region53: #{tpu_custom_call.1} parent=1 // pred_fallthru
      _
    // Predicated region
    $region54: #{tpu_custom_call.1} parent=1 // pred_check
      _
    $region55: #{tpu_custom_call.1} parent=1 // pred_check_branch
      %856 = sbr.rel (0) target = $region57
    $region56: #{tpu_custom_call.1} parent=1 // pred_region
      _
    $region57: #{tpu_custom_call.1} parent=1 // pred_fallthru
      _
    %857 = vsyncpa [#allocation4], 1
    %858 = vsyncpa [#allocation6], 1
    %859 = vsyncpa [#allocation9], 1

</llo_original>
